<compile_context>
chip_gen: v6e
topology: v6e:2x2x1
jax: 0.10.0
libtpu: 0.0.40
codegen_flags: <defaults>
</compile_context>

<pallas_src>
import math
import jax
import jax.numpy as jnp
from jax.experimental import pallas as pl
from jax.experimental.pallas import tpu as pltpu

FILTER_SIZES = (1, 2, 3, 5)
NUM_FILTERS = 36
NUM_CLASSES = 2
KMAX = max(FILTER_SIZES)
F_PAD = 256          # fused conv feature lanes (4*36 = 144 padded up to 2*128)
C_PAD = 128          # classifier output lanes (2 padded up to 128)
K_PAD = 256          # im2col contraction lanes (KMAX*D + 1 bias col = 161 -> 256)


def _round_up(x, m):
    return ((x + m - 1) // m) * m


def _textcnn_kernel(x_ref, wconv_ref, mask_ref, wcls_ref, bcls_ref, o_ref):
    # x_ref:    (BT, Lp, K_PAD)  im2col'ed, scaled activations (+ 1.0 bias column)
    # wconv_ref:(K_PAD, F_PAD)   all filter sizes packed along lanes, conv bias in row KMAX*D
    # mask_ref: (Lp, F_PAD)      f32: 1.0 where time position t is a valid window, else 0.0
    # wcls_ref: (F_PAD, C_PAD)   classifier weight (rows >=144 and cols >=2 are zero)
    # bcls_ref: (1, C_PAD)       classifier bias (f32)
    # o_ref:    (BT, C_PAD)      f32, lane-dense
    bt, lp, kp = x_ref.shape

    # Single fused conv matmul: full 256-lane contraction on the MXU, bias included.
    acc = jnp.dot(x_ref[...].reshape(bt * lp, kp), wconv_ref[...],
                  preferred_element_type=jnp.float32)
    acc = acc.reshape(bt, lp, F_PAD)

    # ReLU then zero-out partial windows / padded time rows.  Correct because
    # relu(.) >= 0, so masked zeros can never exceed a valid window's max.
    acc = jnp.maximum(acc, 0.0) * mask_ref[...][None, :, :]
    pooled = jnp.max(acc, axis=1)                                   # (BT, F_PAD), f32

    # TODO(synk): nn.Dropout(0.1) is identity in eval mode; not applied here.
    out = jnp.dot(pooled.astype(wcls_ref.dtype), wcls_ref[...],
                  preferred_element_type=jnp.float32) + bcls_ref[...]
    o_ref[...] = out                                                # lane-dense (BT, 128)


def _pack_params(conv_ws, conv_bs, wc, bc, lp, L, D, dtype):
    """Pack per-filter-size conv weights into one fused (K_PAD, F_PAD) matrix
    with the conv bias folded into the row that matches the im2col 1.0 column."""
    w_conv = jnp.zeros((K_PAD, F_PAD), jnp.float32)
    mask = jnp.zeros((lp, F_PAD), jnp.float32)
    for j, K in enumerate(FILTER_SIZES):
        c0 = j * NUM_FILTERS
        for k in range(K):
            w_conv = w_conv.at[k * D:(k + 1) * D, c0:c0 + NUM_FILTERS].set(conv_ws[j][k])
        w_conv = w_conv.at[KMAX * D, c0:c0 + NUM_FILTERS].set(conv_bs[j])   # bias row
        mask = mask.at[:L - K + 1, c0:c0 + NUM_FILTERS].set(1.0)

    w_cls = jnp.zeros((F_PAD, C_PAD), jnp.float32)
    w_cls = w_cls.at[:len(FILTER_SIZES) * NUM_FILTERS, :NUM_CLASSES].set(wc)
    b_cls = jnp.zeros((1, C_PAD), jnp.float32)
    b_cls = b_cls.at[0, :NUM_CLASSES].set(bc)
    return w_conv.astype(dtype), mask, w_cls.astype(dtype), b_cls


def _im2col(x_emb, lp, dtype):
    """(B, L, D) -> lane-dense (B, lp, K_PAD): KMAX shifted slices + 1.0 bias col + zeros."""
    B, L, D = x_emb.shape
    xp = jnp.pad(x_emb, ((0, 0), (0, lp + KMAX - 1 - L), (0, 0)))
    cols = [xp[:, k:k + lp, :] for k in range(KMAX)]                # KMAX x (B, lp, D)
    cols.append(jnp.ones((B, lp, 1), x_emb.dtype))                  # bias column
    cols.append(jnp.zeros((B, lp, K_PAD - KMAX * D - 1), x_emb.dtype))
    return jnp.concatenate(cols, axis=-1).astype(dtype)             # (B, lp, K_PAD)


def textcnn_forward(x_emb, conv_ws, conv_bs, wc, bc, *,
                    block_b=512, param_dtype=jnp.bfloat16):
    """x_emb: (B, L, D) already embedded & scaled by sqrt(D)."""
    B, L, D = x_emb.shape
    assert L >= KMAX, "sequence must be at least as long as the largest filter"
    assert KMAX * D + 1 <= K_PAD

    itemsize = jnp.dtype(param_dtype).itemsize
    sublane = 8 * (4 // itemsize)                 # 8 for f32, 16 for bf16 tiles
    lp = _round_up(L, sublane)                    # padded time rows (masked out)

    # Batch tile: >=2 grid steps when there is enough work (fills both v7x TCs),
    # multiple of 8 (output sublane rule), capped by a ~24 MiB VMEM working-set budget.
    per_row = lp * K_PAD * (2 * itemsize + 4)     # double-buffered x tile + f32 acc
    bt_cap = max(8, ((24 * 1024 * 1024) // per_row) // 8 * 8)
    bt = max(8, min(block_b, bt_cap, _round_up(pl.cdiv(B, 2), 8)))
    grid_b = pl.cdiv(B, bt)
    b_padded = grid_b * bt

    x_i2c = _im2col(x_emb, lp, param_dtype)
    x_i2c = jnp.pad(x_i2c, ((0, b_padded - B), (0, 0), (0, 0)))

    w_conv, mask, w_cls, b_cls = _pack_params(conv_ws, conv_bs, wc, bc, lp, L, D, param_dtype)

    out = pl.pallas_call(
        _textcnn_kernel,
        out_shape=jax.ShapeDtypeStruct((b_padded, C_PAD), jnp.float32),
        grid=(grid_b,),
        in_specs=[
            pl.BlockSpec((bt, lp, K_PAD), lambda i: (i, 0, 0)),      # batch-tiled im2col x
            pl.BlockSpec((K_PAD, F_PAD), lambda i: (0, 0)),          # fused conv W (+bias row)
            pl.BlockSpec((lp, F_PAD), lambda i: (0, 0)),             # valid-window mask
            pl.BlockSpec((F_PAD, C_PAD), lambda i: (0, 0)),          # classifier W (padded)
            pl.BlockSpec((1, C_PAD), lambda i: (0, 0)),              # classifier bias
        ],
        out_specs=pl.BlockSpec((bt, C_PAD), lambda i: (i, 0)),
        compiler_params=pltpu.CompilerParams(
            dimension_semantics=("parallel",),
            vmem_limit_bytes=32 * 1024 * 1024,                       # headroom on v7x (64 MiB)
        ),
    )(x_i2c, w_conv, mask, w_cls, b_cls)

    return out[:B, :NUM_CLASSES]


def ref_forward(x_emb, conv_ws, conv_bs, wc, bc):
    # pure-JAX f32 reference of the same math (PyTorch semantics, eval mode)
    feats = []
    for K, w, b in zip(FILTER_SIZES, conv_ws, conv_bs):
        lout = x_emb.shape[1] - K + 1
        acc = sum(jnp.einsum('bld,df->blf', x_emb[:, k:k + lout, :], w[k])
                  for k in range(K))
        acc = jnp.maximum(acc + b[None, None, :], 0.0)
        feats.append(jnp.max(acc, axis=1))
    cat = jnp.concatenate(feats, axis=1)
    return cat @ wc + bc[None, :]


if __name__ == "__main__":
    key = jax.random.PRNGKey(0)
    vocab_size, d_model = 50, 32   # embeddings.size()
    B, L = 4, 16                   # batch, sequence length (>= max filter size 5)

    ks = jax.random.split(key, 13)
    emb_table = jax.random.normal(ks[0], (vocab_size, d_model), jnp.float32)
    x_ids = jax.random.randint(ks[1], (B, L), 0, vocab_size)

    conv_ws, conv_bs = [], []
    for i, K in enumerate(FILTER_SIZES):
        # PyTorch Conv2d weight (F, 1, K, D) stored as (K, D, F); bias (F,)
        conv_ws.append(0.1 * jax.random.normal(ks[2 + 2 * i], (K, d_model, NUM_FILTERS), jnp.float32))
        conv_bs.append(0.1 * jax.random.normal(ks[3 + 2 * i], (NUM_FILTERS,), jnp.float32))
    wc = 0.1 * jax.random.normal(ks[10], (len(FILTER_SIZES) * NUM_FILTERS, NUM_CLASSES), jnp.float32)
    bc = 0.05 * jax.random.normal(ks[11], (NUM_CLASSES,), jnp.float32)

    # glue: sqrt(d_model) folded into the table; embedding gather stays in plain JAX/XLA.
    # TODO(synk): embedding lookup (gather) is left to XLA; no Pallas win at these sizes.
    emb_scaled = emb_table * math.sqrt(d_model)
    x_emb = emb_scaled[x_ids]

    ref = ref_forward(x_emb, conv_ws, conv_bs, wc, bc)

    # f32 path: tight check against the f32 reference
    out = jax.block_until_ready(
        textcnn_forward(x_emb, conv_ws, conv_bs, wc, bc, param_dtype=jnp.float32))
    assert out.shape == (B, NUM_CLASSES)
    assert jnp.allclose(out, ref, atol=1e-4, rtol=1e-4)

    # bf16 path (default, MXU-friendly): looser tolerance vs the f32 reference
    out_bf16 = jax.block_until_ready(textcnn_forward(x_emb, conv_ws, conv_bs, wc, bc))
    assert out_bf16.shape == (B, NUM_CLASSES)
    assert jnp.allclose(out_bf16, ref, atol=0.5, rtol=0.05)

    # multi-tile path (grid > 1, padded batch)
    B2 = 20
    x_ids2 = jax.random.randint(ks[12], (B2, L), 0, vocab_size)
    x_emb2 = emb_scaled[x_ids2]
    out2 = jax.block_until_ready(
        textcnn_forward(x_emb2, conv_ws, conv_bs, wc, bc, block_b=8,
                        param_dtype=jnp.float32))
    ref2 = ref_forward(x_emb2, conv_ws, conv_bs, wc, bc)
    assert out2.shape == (B2, NUM_CLASSES)
    assert jnp.allclose(out2, ref2, atol=1e-4, rtol=1e-4)

    print("KERNEL_OK")
</pallas_src>

<mosaic_0001>
module attributes {stable_mosaic.version = 11 : i64} {
  func.func @_textcnn_kernel(%arg0: i32, %arg1: memref<8x16x256xf32, #tpu.memory_space<vmem>>, %arg2: memref<256x256xf32, #tpu.memory_space<vmem>>, %arg3: memref<16x256xf32, #tpu.memory_space<vmem>>, %arg4: memref<256x128xf32, #tpu.memory_space<vmem>>, %arg5: memref<1x128xf32, #tpu.memory_space<vmem>>, %arg6: memref<8x128xf32, #tpu.memory_space<vmem>>) attributes {dimension_semantics = [#tpu.dimension_semantics<parallel>], iteration_bounds = array<i64: 1>, scalar_prefetch = 0 : i64, scratch_operands = 0 : i64, tpu.core_type = #tpu.core_type<tc>, window_params = [{transform_indices = @transform_0, window_bounds = array<i64: 8, 16, 256>}, {pipeline_mode = #tpu.pipeline_mode<synchronous>, transform_indices = @transform_1, window_bounds = array<i64: 256, 256>}, {pipeline_mode = #tpu.pipeline_mode<synchronous>, transform_indices = @transform_2, window_bounds = array<i64: 16, 256>}, {pipeline_mode = #tpu.pipeline_mode<synchronous>, transform_indices = @transform_3, window_bounds = array<i64: 256, 128>}, {pipeline_mode = #tpu.pipeline_mode<synchronous>, transform_indices = @transform_4, window_bounds = array<i64: 1, 128>}, {transform_indices = @transform_5, window_bounds = array<i64: 8, 128>}]} {
    %c0 = arith.constant 0 : index
    %c0_0 = arith.constant 0 : index
    %c0_1 = arith.constant 0 : index
    %0 = vector.load %arg1[%c0, %c0_0, %c0_1] : memref<8x16x256xf32, #tpu.memory_space<vmem>>, vector<8x16x256xf32>
    %1 = vector.shape_cast %0 : vector<8x16x256xf32> to vector<128x256xf32>
    %c0_2 = arith.constant 0 : index
    %c0_3 = arith.constant 0 : index
    %2 = vector.load %arg2[%c0_2, %c0_3] : memref<256x256xf32, #tpu.memory_space<vmem>>, vector<256x256xf32>
    %cst = arith.constant dense<0.000000e+00> : vector<128x256xf32>
    %3 = tpu.matmul %1, %2, %cst {dimension_numbers = #tpu.dot_dimension_numbers<[1], [0], [0], [1], [0, 0, 1, 1], [], []>} : vector<128x256xf32>, vector<256x256xf32>, vector<128x256xf32> -> vector<128x256xf32>
    %4 = vector.shape_cast %3 : vector<128x256xf32> to vector<8x16x256xf32>
    %cst_4 = arith.constant 0.000000e+00 : f32
    %5 = vector.broadcast %cst_4 : f32 to vector<8x16x256xf32>
    %6 = arith.maximumf %4, %5 : vector<8x16x256xf32>
    %c0_5 = arith.constant 0 : index
    %c0_6 = arith.constant 0 : index
    %7 = vector.load %arg3[%c0_5, %c0_6] : memref<16x256xf32, #tpu.memory_space<vmem>>, vector<16x256xf32>
    %8 = vector.shape_cast %7 : vector<16x256xf32> to vector<1x16x256xf32>
    %9 = vector.broadcast %8 : vector<1x16x256xf32> to vector<8x16x256xf32>
    %10 = arith.mulf %6, %9 : vector<8x16x256xf32>
    %cst_7 = arith.constant dense<0xFF800000> : vector<8x256xf32>
    %11 = vector.multi_reduction <maximumf>, %10, %cst_7 [1] : vector<8x16x256xf32> to vector<8x256xf32>
    %c0_8 = arith.constant 0 : index
    %c0_9 = arith.constant 0 : index
    %12 = vector.load %arg4[%c0_8, %c0_9] : memref<256x128xf32, #tpu.memory_space<vmem>>, vector<256x128xf32>
    %cst_10 = arith.constant dense<0.000000e+00> : vector<8x128xf32>
    %13 = tpu.matmul %11, %12, %cst_10 {dimension_numbers = #tpu.dot_dimension_numbers<[1], [0], [0], [1], [0, 0, 1, 1], [], []>} : vector<8x256xf32>, vector<256x128xf32>, vector<8x128xf32> -> vector<8x128xf32>
    %c0_11 = arith.constant 0 : index
    %c0_12 = arith.constant 0 : index
    %14 = vector.load %arg5[%c0_11, %c0_12] : memref<1x128xf32, #tpu.memory_space<vmem>>, vector<1x128xf32>
    %15 = vector.broadcast %14 : vector<1x128xf32> to vector<8x128xf32>
    %16 = arith.addf %13, %15 : vector<8x128xf32>
    %c0_13 = arith.constant 0 : index
    %c0_14 = arith.constant 0 : index
    %17 = vector.load %arg6[%c0_13, %c0_14] : memref<8x128xf32, #tpu.memory_space<vmem>>, vector<8x128xf32>
    tpu.vector_store %arg6[%c0_13, %c0_14], %16 {strides = array<i32>} : memref<8x128xf32, #tpu.memory_space<vmem>>, vector<8x128xf32>,
    return
  }
  func.func @transform_0(%arg0: i32) -> (i32, i32, i32) {
    %c0_i32 = arith.constant 0 : i32
    %c0_i32_0 = arith.constant 0 : i32
    %c0_i32_1 = arith.constant 0 : i32
    return %arg0, %c0_i32, %c0_i32_0 : i32, i32, i32
  }
  func.func @transform_1(%arg0: i32) -> (i32, i32) {
    %c0_i32 = arith.constant 0 : i32
    %c0_i32_0 = arith.constant 0 : i32
    %c0_i32_1 = arith.constant 0 : i32
    return %c0_i32, %c0_i32_0 : i32, i32
  }
  func.func @transform_2(%arg0: i32) -> (i32, i32) {
    %c0_i32 = arith.constant 0 : i32
    %c0_i32_0 = arith.constant 0 : i32
    %c0_i32_1 = arith.constant 0 : i32
    return %c0_i32, %c0_i32_0 : i32, i32
  }
  func.func @transform_3(%arg0: i32) -> (i32, i32) {
    %c0_i32 = arith.constant 0 : i32
    %c0_i32_0 = arith.constant 0 : i32
    %c0_i32_1 = arith.constant 0 : i32
    return %c0_i32, %c0_i32_0 : i32, i32
  }
  func.func @transform_4(%arg0: i32) -> (i32, i32) {
    %c0_i32 = arith.constant 0 : i32
    %c0_i32_0 = arith.constant 0 : i32
    %c0_i32_1 = arith.constant 0 : i32
    return %c0_i32, %c0_i32_0 : i32, i32
  }
  func.func @transform_5(%arg0: i32) -> (i32, i32) {
    %c0_i32 = arith.constant 0 : i32
    %c0_i32_0 = arith.constant 0 : i32
    return %arg0, %c0_i32 : i32, i32
  }
}

</mosaic_0001>

<llo_original>
// kernel: tpu_custom_call.1
$region0: #{tpu_custom_call.1}
  #allocation0 [shape = 'u32[]', space=smem, size = 0x4, offset = 0x4, fixed_abs, tag = 'smem constant byte address 0x4 - core index']
  #allocation1 [shape = 'u32[144,128]{1,0:T(1,128)}', space=vmem, size = 0x12000, scoped, tag = 'internal scratch']
  %s0 = inlined_call_operand.hbm [shape: f32[8,16,256], index: 0, kind: input, shape index: {}]
  %s1 = inlined_call_operand.hbm [shape: f32[256,256], index: 1, kind: input, shape index: {}]
  %s2 = inlined_call_operand.hbm [shape: f32[16,256], index: 2, kind: input, shape index: {}]
  %s3 = inlined_call_operand.hbm [shape: f32[256,128], index: 3, kind: input, shape index: {}]
  %s4 = inlined_call_operand.vmem [shape: f32[1,128], index: 4, kind: input, shape index: {}]
  %s5 = inlined_call_operand.hbm [shape: f32[8,128], index: 5, kind: output, shape index: {}]
  %s6 = sld [smem:[#allocation0]]
  $region46: #{tpu_custom_call.1} parent=0
    _
  %s8 = ssub.s32 1, %s6
  %s9 = scalar_select 0, %s8, %s6
  $region1: #{tpu_custom_call.1} parent=0
    #allocation2 [shape = 'u8[131072]{0}', space=vmem, size = 0x20000, scoped, tag = 'input window, operand 0, single buffered']
    #allocation3 [shape = 's32[1]{0}', space=sflag, size = 0x4, scoped, tag = 'scoped memory for tpu_custom_call.1']
    #allocation4 [shape = 's32[1]{0}', space=sflag, size = 0x4, scoped, tag = 'scoped memory for tpu_custom_call.1']
    #allocation5 [shape = 'u8[262144]{0}', space=vmem, size = 0x40000, scoped, tag = 'input window, operand 1, single buffered']
    #allocation6 [shape = 's32[1]{0}', space=sflag, size = 0x4, scoped, tag = 'scoped memory for tpu_custom_call.1']
    #allocation7 [shape = 'u8[16384]{0}', space=vmem, size = 0x4000, scoped, tag = 'input window, operand 2, single buffered']
    #allocation8 [shape = 'u8[131072]{0}', space=vmem, size = 0x20000, scoped, tag = 'input window, operand 3, single buffered']
    #allocation9 [shape = 's32[1]{0}', space=sflag, size = 0x4, scoped, tag = 'scoped memory for tpu_custom_call.1']
    #allocation10 [shape = 'u8[4096]{0}', space=vmem, size = 0x1000, scoped, tag = 'output window, operand 0, single buffered']
    %10 = vsyncpa [#allocation3], 0
    %11 = vsyncpa [#allocation6], 0
    %12 = vsyncpa [#allocation9], 0
    %13 = vsyncpa [#allocation4], 0
    // Predicated region
    $region2: #{tpu_custom_call.1} parent=1 // pred_check
      _
    $region3: #{tpu_custom_call.1} parent=1 // pred_check_branch
      %15 = sbr.rel (0) target = $region5
    $region4: #{tpu_custom_call.1} parent=1 // pred_region
      %s17 = ssub.s32 4096, 4096
      %18 = vsyncadd [#allocation3], %s17
      %s19 = sshll.u32 [#allocation2], 4
      %s20 = int_to_ptr.vmem [resolvable:$true] %s19
      %25 = dma.hbm_to_vmem [thread:$0]  %s0, 4096, %s20, [#allocation3], 256, 256, 16
    $region5: #{tpu_custom_call.1} parent=1 // pred_fallthru
      _
    // Predicated region
    $region6: #{tpu_custom_call.1} parent=1 // pred_check
      _
    $region7: #{tpu_custom_call.1} parent=1 // pred_check_branch
      %27 = sbr.rel (0) target = $region9
    $region8: #{tpu_custom_call.1} parent=1 // pred_region
      %s29 = ssub.s32 8192, 8192
      %30 = vsyncadd [#allocation6], %s29
      %s31 = sshll.u32 [#allocation5], 4
      %s32 = int_to_ptr.vmem [resolvable:$true] %s31
      %37 = dma.hbm_to_vmem [thread:$0]  %s1, 8192, %s32, [#allocation6], 256, 256, 16
    $region9: #{tpu_custom_call.1} parent=1 // pred_fallthru
      _
    // Predicated region
    $region10: #{tpu_custom_call.1} parent=1 // pred_check
      _
    $region11: #{tpu_custom_call.1} parent=1 // pred_check_branch
      %39 = sbr.rel (0) target = $region13
    $region12: #{tpu_custom_call.1} parent=1 // pred_region
      %s41 = ssub.s32 512, 512
      %42 = vsyncadd [#allocation6], %s41
      %s43 = sshll.u32 [#allocation7], 4
      %s44 = int_to_ptr.vmem [resolvable:$true] %s43
      %49 = dma.hbm_to_vmem [thread:$0]  %s2, 512, %s44, [#allocation6], 256, 256, 16
    $region13: #{tpu_custom_call.1} parent=1 // pred_fallthru
      _
    // Predicated region
    $region14: #{tpu_custom_call.1} parent=1 // pred_check
      _
    $region15: #{tpu_custom_call.1} parent=1 // pred_check_branch
      %51 = sbr.rel (0) target = $region17
    $region16: #{tpu_custom_call.1} parent=1 // pred_region
      %s53 = ssub.s32 4096, 4096
      %54 = vsyncadd [#allocation9], %s53
      %s55 = sshll.u32 [#allocation8], 4
      %s56 = int_to_ptr.vmem [resolvable:$true] %s55
      %61 = dma.hbm_to_vmem [thread:$0]  %s3, 4096, %s56, [#allocation9], 128, 128, 8
    $region17: #{tpu_custom_call.1} parent=1 // pred_fallthru
      _
    // Predicated region
    $region18: #{tpu_custom_call.1} parent=1 // pred_check
      _
    $region19: #{tpu_custom_call.1} parent=1 // pred_check_branch
      %63 = sbr.rel (0) target = $region21
    $region20: #{tpu_custom_call.1} parent=1 // pred_region
      _
    $region21: #{tpu_custom_call.1} parent=1 // pred_fallthru
      _
    // Predicated region
    $region22: #{tpu_custom_call.1} parent=1 // pred_check
      _
    $region23: #{tpu_custom_call.1} parent=1 // pred_check_branch
      %65 = sbr.rel (0) target = $region25
    $region24: #{tpu_custom_call.1} parent=1 // pred_region
      %66 = dma.done [#allocation3], 4096
    $region25: #{tpu_custom_call.1} parent=1 // pred_fallthru
      _
    // Predicated region
    $region26: #{tpu_custom_call.1} parent=1 // pred_check
      _
    $region27: #{tpu_custom_call.1} parent=1 // pred_check_branch
      %68 = sbr.rel (0) target = $region29
    $region28: #{tpu_custom_call.1} parent=1 // pred_region
      %69 = dma.done [#allocation6], 8192
    $region29: #{tpu_custom_call.1} parent=1 // pred_fallthru
      _
    // Predicated region
    $region30: #{tpu_custom_call.1} parent=1 // pred_check
      _
    $region31: #{tpu_custom_call.1} parent=1 // pred_check_branch
      %71 = sbr.rel (0) target = $region33
    $region32: #{tpu_custom_call.1} parent=1 // pred_region
      %72 = dma.done [#allocation6], 512
    $region33: #{tpu_custom_call.1} parent=1 // pred_fallthru
      _
    // Predicated region
    $region34: #{tpu_custom_call.1} parent=1 // pred_check
      _
    $region35: #{tpu_custom_call.1} parent=1 // pred_check_branch
      %74 = sbr.rel (0) target = $region37
    $region36: #{tpu_custom_call.1} parent=1 // pred_region
      %75 = dma.done [#allocation9], 4096
    $region37: #{tpu_custom_call.1} parent=1 // pred_fallthru
      _
    %v76 = vld [vmem:[#allocation2] sm:$0xff]
    %v77 = vld [vmem:[#allocation2 + $0x8] sm:$0xff]
    %v78 = vld [vmem:[#allocation2 + $0x10] sm:$0xff]
    %v79 = vld [vmem:[#allocation2 + $0x18] sm:$0xff]
    %v80 = vld [vmem:[#allocation2 + $0x20] sm:$0xff]
    %v81 = vld [vmem:[#allocation2 + $0x28] sm:$0xff]
    %v82 = vld [vmem:[#allocation2 + $0x30] sm:$0xff]
    %v83 = vld [vmem:[#allocation2 + $0x38] sm:$0xff]
    %v84 = vld [vmem:[#allocation2 + $0x40] sm:$0xff]
    %v85 = vld [vmem:[#allocation2 + $0x48] sm:$0xff]
    %v86 = vld [vmem:[#allocation2 + $0x50] sm:$0xff]
    %v87 = vld [vmem:[#allocation2 + $0x58] sm:$0xff]
    %v88 = vld [vmem:[#allocation2 + $0x60] sm:$0xff]
    %v89 = vld [vmem:[#allocation2 + $0x68] sm:$0xff]
    %v90 = vld [vmem:[#allocation2 + $0x70] sm:$0xff]
    %v91 = vld [vmem:[#allocation2 + $0x78] sm:$0xff]
    %v92 = vld [vmem:[#allocation2 + $0x80] sm:$0xff]
    %v93 = vld [vmem:[#allocation2 + $0x88] sm:$0xff]
    %v94 = vld [vmem:[#allocation2 + $0x90] sm:$0xff]
    %v95 = vld [vmem:[#allocation2 + $0x98] sm:$0xff]
    %v96 = vld [vmem:[#allocation2 + $0xa0] sm:$0xff]
    %v97 = vld [vmem:[#allocation2 + $0xa8] sm:$0xff]
    %v98 = vld [vmem:[#allocation2 + $0xb0] sm:$0xff]
    %v99 = vld [vmem:[#allocation2 + $0xb8] sm:$0xff]
    %v100 = vld [vmem:[#allocation2 + $0xc0] sm:$0xff]
    %v101 = vld [vmem:[#allocation2 + $0xc8] sm:$0xff]
    %v102 = vld [vmem:[#allocation2 + $0xd0] sm:$0xff]
    %v103 = vld [vmem:[#allocation2 + $0xd8] sm:$0xff]
    %v104 = vld [vmem:[#allocation2 + $0xe0] sm:$0xff]
    %v105 = vld [vmem:[#allocation2 + $0xe8] sm:$0xff]
    %v106 = vld [vmem:[#allocation2 + $0xf0] sm:$0xff]
    %v107 = vld [vmem:[#allocation2 + $0xf8] sm:$0xff]
    %v108 = vld [vmem:[#allocation5] sm:$0xff]
    %v109 = vld [vmem:[#allocation5 + $0x8] sm:$0xff]
    %v110 = vld [vmem:[#allocation5 + $0x10] sm:$0xff]
    %v111 = vld [vmem:[#allocation5 + $0x18] sm:$0xff]
    %v112 = vld [vmem:[#allocation5 + $0x20] sm:$0xff]
    %v113 = vld [vmem:[#allocation5 + $0x28] sm:$0xff]
    %v114 = vld [vmem:[#allocation5 + $0x30] sm:$0xff]
    %v115 = vld [vmem:[#allocation5 + $0x38] sm:$0xff]
    %v116 = vld [vmem:[#allocation5 + $0x40] sm:$0xff]
    %v117 = vld [vmem:[#allocation5 + $0x48] sm:$0xff]
    %v118 = vld [vmem:[#allocation5 + $0x50] sm:$0xff]
    %v119 = vld [vmem:[#allocation5 + $0x58] sm:$0xff]
    %v120 = vld [vmem:[#allocation5 + $0x60] sm:$0xff]
    %v121 = vld [vmem:[#allocation5 + $0x68] sm:$0xff]
    %v122 = vld [vmem:[#allocation5 + $0x70] sm:$0xff]
    %v123 = vld [vmem:[#allocation5 + $0x78] sm:$0xff]
    %v124 = vld [vmem:[#allocation5 + $0x80] sm:$0xff]
    %v125 = vld [vmem:[#allocation5 + $0x88] sm:$0xff]
    %v126 = vld [vmem:[#allocation5 + $0x90] sm:$0xff]
    %v127 = vld [vmem:[#allocation5 + $0x98] sm:$0xff]
    %v128 = vld [vmem:[#allocation5 + $0xa0] sm:$0xff]
    %v129 = vld [vmem:[#allocation5 + $0xa8] sm:$0xff]
    %v130 = vld [vmem:[#allocation5 + $0xb0] sm:$0xff]
    %v131 = vld [vmem:[#allocation5 + $0xb8] sm:$0xff]
    %v132 = vld [vmem:[#allocation5 + $0xc0] sm:$0xff]
    %v133 = vld [vmem:[#allocation5 + $0xc8] sm:$0xff]
    %v134 = vld [vmem:[#allocation5 + $0xd0] sm:$0xff]
    %v135 = vld [vmem:[#allocation5 + $0xd8] sm:$0xff]
    %v136 = vld [vmem:[#allocation5 + $0xe0] sm:$0xff]
    %v137 = vld [vmem:[#allocation5 + $0xe8] sm:$0xff]
    %v138 = vld [vmem:[#allocation5 + $0xf0] sm:$0xff]
    %v139 = vld [vmem:[#allocation5 + $0xf8] sm:$0xff]
    %v140 = vld [vmem:[#allocation5 + $0x100] sm:$0xff]
    %v141 = vld [vmem:[#allocation5 + $0x108] sm:$0xff]
    %v142 = vld [vmem:[#allocation5 + $0x110] sm:$0xff]
    %v143 = vld [vmem:[#allocation5 + $0x118] sm:$0xff]
    %v144 = vld [vmem:[#allocation5 + $0x120] sm:$0xff]
    %v145 = vld [vmem:[#allocation5 + $0x128] sm:$0xff]
    %v146 = vld [vmem:[#allocation5 + $0x130] sm:$0xff]
    %v147 = vld [vmem:[#allocation5 + $0x138] sm:$0xff]
    %v148 = vld [vmem:[#allocation5 + $0x140] sm:$0xff]
    %v149 = vld [vmem:[#allocation5 + $0x148] sm:$0xff]
    %v150 = vld [vmem:[#allocation5 + $0x150] sm:$0xff]
    %v151 = vld [vmem:[#allocation5 + $0x158] sm:$0xff]
    %v152 = vld [vmem:[#allocation5 + $0x160] sm:$0xff]
    %v153 = vld [vmem:[#allocation5 + $0x168] sm:$0xff]
    %v154 = vld [vmem:[#allocation5 + $0x170] sm:$0xff]
    %v155 = vld [vmem:[#allocation5 + $0x178] sm:$0xff]
    %v156 = vld [vmem:[#allocation5 + $0x180] sm:$0xff]
    %v157 = vld [vmem:[#allocation5 + $0x188] sm:$0xff]
    %v158 = vld [vmem:[#allocation5 + $0x190] sm:$0xff]
    %v159 = vld [vmem:[#allocation5 + $0x198] sm:$0xff]
    %v160 = vld [vmem:[#allocation5 + $0x1a0] sm:$0xff]
    %v161 = vld [vmem:[#allocation5 + $0x1a8] sm:$0xff]
    %v162 = vld [vmem:[#allocation5 + $0x1b0] sm:$0xff]
    %v163 = vld [vmem:[#allocation5 + $0x1b8] sm:$0xff]
    %v164 = vld [vmem:[#allocation5 + $0x1c0] sm:$0xff]
    %v165 = vld [vmem:[#allocation5 + $0x1c8] sm:$0xff]
    %v166 = vld [vmem:[#allocation5 + $0x1d0] sm:$0xff]
    %v167 = vld [vmem:[#allocation5 + $0x1d8] sm:$0xff]
    %v168 = vld [vmem:[#allocation5 + $0x1e0] sm:$0xff]
    %v169 = vld [vmem:[#allocation5 + $0x1e8] sm:$0xff]
    %v170 = vld [vmem:[#allocation5 + $0x1f0] sm:$0xff]
    %v171 = vld [vmem:[#allocation5 + $0x1f8] sm:$0xff]
    %172 = vmatprep.subr.mxu0 %v139
    %173 = vmatpush1.msra.mxu0 %v138
    %174 = vmatprep.subr.mxu0 %v137
    %175 = vmatpush1.msra.mxu0 %v136
    %176 = vmatprep.subr.mxu0 %v135
    %177 = vmatpush1.msra.mxu0 %v134
    %178 = vmatprep.subr.mxu0 %v133
    %179 = vmatpush1.msra.mxu0 %v132
    %180 = vmatprep.subr.mxu0 %v131
    %181 = vmatpush1.msra.mxu0 %v130
    %182 = vmatprep.subr.mxu0 %v129
    %183 = vmatpush1.msra.mxu0 %v128
    %184 = vmatprep.subr.mxu0 %v127
    %185 = vmatpush1.msra.mxu0 %v126
    %186 = vmatprep.subr.mxu0 %v125
    %187 = vmatpush1.msra.mxu0 %v124
    %188 = vmatprep.subr.mxu0 %v123
    %189 = vmatpush1.msra.mxu0 %v122
    %190 = vmatprep.subr.mxu0 %v121
    %191 = vmatpush1.msra.mxu0 %v120
    %192 = vmatprep.subr.mxu0 %v119
    %193 = vmatpush1.msra.mxu0 %v118
    %194 = vmatprep.subr.mxu0 %v117
    %195 = vmatpush1.msra.mxu0 %v116
    %196 = vmatprep.subr.mxu0 %v115
    %197 = vmatpush1.msra.mxu0 %v114
    %198 = vmatprep.subr.mxu0 %v113
    %199 = vmatpush1.msra.mxu0 %v112
    %200 = vmatprep.subr.mxu0 %v111
    %201 = vmatpush1.msra.mxu0 %v110
    %202 = vmatprep.subr.mxu0 %v109
    %203 = vmatpush1.msra.mxu0 %v108
    %204 = vmatprep.subr.mxu0 %v171
    %205 = vmatpush2.msra.mxu0 %v170
    %206 = vmatprep.subr.mxu0 %v169
    %207 = vmatpush2.msra.mxu0 %v168
    %208 = vmatprep.subr.mxu0 %v167
    %209 = vmatpush2.msra.mxu0 %v166
    %210 = vmatprep.subr.mxu0 %v165
    %211 = vmatpush2.msra.mxu0 %v164
    %212 = vmatprep.subr.mxu0 %v163
    %213 = vmatpush2.msra.mxu0 %v162
    %214 = vmatprep.subr.mxu0 %v161
    %215 = vmatpush2.msra.mxu0 %v160
    %216 = vmatprep.subr.mxu0 %v159
    %217 = vmatpush2.msra.mxu0 %v158
    %218 = vmatprep.subr.mxu0 %v157
    %219 = vmatpush2.msra.mxu0 %v156
    %220 = vmatprep.subr.mxu0 %v155
    %221 = vmatpush2.msra.mxu0 %v154
    %222 = vmatprep.subr.mxu0 %v153
    %223 = vmatpush2.msra.mxu0 %v152
    %224 = vmatprep.subr.mxu0 %v151
    %225 = vmatpush2.msra.mxu0 %v150
    %226 = vmatprep.subr.mxu0 %v149
    %227 = vmatpush2.msra.mxu0 %v148
    %228 = vmatprep.subr.mxu0 %v147
    %229 = vmatpush2.msra.mxu0 %v146
    %230 = vmatprep.subr.mxu0 %v145
    %231 = vmatpush2.msra.mxu0 %v144
    %232 = vmatprep.subr.mxu0 %v143
    %233 = vmatpush2.msra.mxu0 %v142
    %234 = vmatprep.subr.mxu0 %v141
    %235 = vmatpush2.msra.mxu0 %v140
    %236 = vmatprep.mubr.f32.mxu0 %v77
    %237 = vmatmul.mubr.f32.gmra.mxu0 %v76
    %v238 = vpop.f32.mrf.mxu0
    %v239 = vadd.f32 0.0, %v238
    %v240 = vpop.f32.mrf.mxu0
    %v241 = vadd.f32 0.0, %v240
    %242 = vmatprep.mubr.f32.mxu0 %v79
    %243 = vmatmul.mubr.f32.gmra.mxu0 %v78
    %v244 = vpop.f32.mrf.mxu0
    %v245 = vadd.f32 0.0, %v244
    %v246 = vpop.f32.mrf.mxu0
    %v247 = vadd.f32 0.0, %v246
    %248 = vmatprep.mubr.f32.mxu0 %v81
    %249 = vmatmul.mubr.f32.gmra.mxu0 %v80
    %v250 = vpop.f32.mrf.mxu0
    %v251 = vadd.f32 0.0, %v250
    %v252 = vpop.f32.mrf.mxu0
    %v253 = vadd.f32 0.0, %v252
    %254 = vmatprep.mubr.f32.mxu0 %v83
    %255 = vmatmul.mubr.f32.gmra.mxu0 %v82
    %v256 = vpop.f32.mrf.mxu0
    %v257 = vadd.f32 0.0, %v256
    %v258 = vpop.f32.mrf.mxu0
    %v259 = vadd.f32 0.0, %v258
    %260 = vmatprep.mubr.f32.mxu0 %v85
    %261 = vmatmul.mubr.f32.gmra.mxu0 %v84
    %v262 = vpop.f32.mrf.mxu0
    %v263 = vadd.f32 0.0, %v262
    %v264 = vpop.f32.mrf.mxu0
    %v265 = vadd.f32 0.0, %v264
    %266 = vmatprep.mubr.f32.mxu0 %v87
    %267 = vmatmul.mubr.f32.gmra.mxu0 %v86
    %v268 = vpop.f32.mrf.mxu0
    %v269 = vadd.f32 0.0, %v268
    %v270 = vpop.f32.mrf.mxu0
    %v271 = vadd.f32 0.0, %v270
    %272 = vmatprep.mubr.f32.mxu0 %v89
    %273 = vmatmul.mubr.f32.gmra.mxu0 %v88
    %v274 = vpop.f32.mrf.mxu0
    %v275 = vadd.f32 0.0, %v274
    %v276 = vpop.f32.mrf.mxu0
    %v277 = vadd.f32 0.0, %v276
    %278 = vmatprep.mubr.f32.mxu0 %v91
    %279 = vmatmul.mubr.f32.gmra.mxu0 %v90
    %v280 = vpop.f32.mrf.mxu0
    %v281 = vadd.f32 0.0, %v280
    %v282 = vpop.f32.mrf.mxu0
    %v283 = vadd.f32 0.0, %v282
    %284 = vmatprep.mubr.f32.mxu0 %v93
    %285 = vmatmul.mubr.f32.gmra.mxu0 %v92
    %v286 = vpop.f32.mrf.mxu0
    %v287 = vadd.f32 0.0, %v286
    %v288 = vpop.f32.mrf.mxu0
    %v289 = vadd.f32 0.0, %v288
    %290 = vmatprep.mubr.f32.mxu0 %v95
    %291 = vmatmul.mubr.f32.gmra.mxu0 %v94
    %v292 = vpop.f32.mrf.mxu0
    %v293 = vadd.f32 0.0, %v292
    %v294 = vpop.f32.mrf.mxu0
    %v295 = vadd.f32 0.0, %v294
    %296 = vmatprep.mubr.f32.mxu0 %v97
    %297 = vmatmul.mubr.f32.gmra.mxu0 %v96
    %v298 = vpop.f32.mrf.mxu0
    %v299 = vadd.f32 0.0, %v298
    %v300 = vpop.f32.mrf.mxu0
    %v301 = vadd.f32 0.0, %v300
    %302 = vmatprep.mubr.f32.mxu0 %v99
    %303 = vmatmul.mubr.f32.gmra.mxu0 %v98
    %v304 = vpop.f32.mrf.mxu0
    %v305 = vadd.f32 0.0, %v304
    %v306 = vpop.f32.mrf.mxu0
    %v307 = vadd.f32 0.0, %v306
    %308 = vmatprep.mubr.f32.mxu0 %v101
    %309 = vmatmul.mubr.f32.gmra.mxu0 %v100
    %v310 = vpop.f32.mrf.mxu0
    %v311 = vadd.f32 0.0, %v310
    %v312 = vpop.f32.mrf.mxu0
    %v313 = vadd.f32 0.0, %v312
    %314 = vmatprep.mubr.f32.mxu0 %v103
    %315 = vmatmul.mubr.f32.gmra.mxu0 %v102
    %v316 = vpop.f32.mrf.mxu0
    %v317 = vadd.f32 0.0, %v316
    %v318 = vpop.f32.mrf.mxu0
    %v319 = vadd.f32 0.0, %v318
    %320 = vmatprep.mubr.f32.mxu0 %v105
    %321 = vmatmul.mubr.f32.gmra.mxu0 %v104
    %v322 = vpop.f32.mrf.mxu0
    %v323 = vadd.f32 0.0, %v322
    %v324 = vpop.f32.mrf.mxu0
    %v325 = vadd.f32 0.0, %v324
    %326 = vmatprep.mubr.f32.mxu0 %v107
    %327 = vmatmul.mubr.f32.gmra.mxu0 %v106
    %v328 = vpop.f32.mrf.mxu0
    %v329 = vadd.f32 0.0, %v328
    %v330 = vpop.f32.mrf.mxu0
    %v331 = vadd.f32 0.0, %v330
    %332 = vdwg.mxu0
    %v333 = vmax.f32 %v239, 0.0
    %v334 = vmax.f32 %v241, 0.0
    %v335 = vmax.f32 %v245, 0.0
    %v336 = vmax.f32 %v247, 0.0
    %v337 = vmax.f32 %v251, 0.0
    %v338 = vmax.f32 %v253, 0.0
    %v339 = vmax.f32 %v257, 0.0
    %v340 = vmax.f32 %v259, 0.0
    %v341 = vmax.f32 %v263, 0.0
    %v342 = vmax.f32 %v265, 0.0
    %v343 = vmax.f32 %v269, 0.0
    %v344 = vmax.f32 %v271, 0.0
    %v345 = vmax.f32 %v275, 0.0
    %v346 = vmax.f32 %v277, 0.0
    %v347 = vmax.f32 %v281, 0.0
    %v348 = vmax.f32 %v283, 0.0
    %v349 = vmax.f32 %v287, 0.0
    %v350 = vmax.f32 %v289, 0.0
    %v351 = vmax.f32 %v293, 0.0
    %v352 = vmax.f32 %v295, 0.0
    %v353 = vmax.f32 %v299, 0.0
    %v354 = vmax.f32 %v301, 0.0
    %v355 = vmax.f32 %v305, 0.0
    %v356 = vmax.f32 %v307, 0.0
    %v357 = vmax.f32 %v311, 0.0
    %v358 = vmax.f32 %v313, 0.0
    %v359 = vmax.f32 %v317, 0.0
    %v360 = vmax.f32 %v319, 0.0
    %v361 = vmax.f32 %v323, 0.0
    %v362 = vmax.f32 %v325, 0.0
    %v363 = vmax.f32 %v329, 0.0
    %v364 = vmax.f32 %v331, 0.0
    %v365 = vld [vmem:[#allocation7] sm:$0xff]
    %v366 = vld [vmem:[#allocation7 + $0x8] sm:$0xff]
    %v367 = vld [vmem:[#allocation7 + $0x10] sm:$0xff]
    %v368 = vld [vmem:[#allocation7 + $0x18] sm:$0xff]
    %v369 = vmul.f32 %v333, %v365
    %v370 = vmul.f32 %v334, %v366
    %v371 = vmul.f32 %v335, %v367
    %v372 = vmul.f32 %v336, %v368
    %v373 = vmul.f32 %v337, %v365
    %v374 = vmul.f32 %v338, %v366
    %v375 = vmul.f32 %v339, %v367
    %v376 = vmul.f32 %v340, %v368
    %v377 = vmul.f32 %v341, %v365
    %v378 = vmul.f32 %v342, %v366
    %v379 = vmul.f32 %v343, %v367
    %v380 = vmul.f32 %v344, %v368
    %v381 = vmul.f32 %v345, %v365
    %v382 = vmul.f32 %v346, %v366
    %v383 = vmul.f32 %v347, %v367
    %v384 = vmul.f32 %v348, %v368
    %v385 = vmul.f32 %v349, %v365
    %v386 = vmul.f32 %v350, %v366
    %v387 = vmul.f32 %v351, %v367
    %v388 = vmul.f32 %v352, %v368
    %v389 = vmul.f32 %v353, %v365
    %v390 = vmul.f32 %v354, %v366
    %v391 = vmul.f32 %v355, %v367
    %v392 = vmul.f32 %v356, %v368
    %v393 = vmul.f32 %v357, %v365
    %v394 = vmul.f32 %v358, %v366
    %v395 = vmul.f32 %v359, %v367
    %v396 = vmul.f32 %v360, %v368
    %v397 = vmul.f32 %v361, %v365
    %v398 = vmul.f32 %v362, %v366
    %v399 = vmul.f32 %v363, %v367
    %v400 = vmul.f32 %v364, %v368
    %v401 = vmax.f32 %v369, %v371
    %v402 = vrot.slane %v401, 4
    %v403 = vmax.f32 %v401, %v402
    %v404 = vrot.slane %v403, 2
    %v405 = vmax.f32 %v403, %v404
    %v406 = vrot.slane %v405, 1
    %v407 = vmax.f32 %v405, %v406
    %v408 = vmax.f32 %v370, %v372
    %v409 = vrot.slane %v408, 4
    %v410 = vmax.f32 %v408, %v409
    %v411 = vrot.slane %v410, 2
    %v412 = vmax.f32 %v410, %v411
    %v413 = vrot.slane %v412, 1
    %v414 = vmax.f32 %v412, %v413
    %v415 = vmax.f32 %v373, %v375
    %v416 = vrot.slane %v415, 4
    %v417 = vmax.f32 %v415, %v416
    %v418 = vrot.slane %v417, 2
    %v419 = vmax.f32 %v417, %v418
    %v420 = vrot.slane %v419, 1
    %v421 = vmax.f32 %v419, %v420
    %v422 = vmax.f32 %v374, %v376
    %v423 = vrot.slane %v422, 4
    %v424 = vmax.f32 %v422, %v423
    %v425 = vrot.slane %v424, 2
    %v426 = vmax.f32 %v424, %v425
    %v427 = vrot.slane %v426, 1
    %v428 = vmax.f32 %v426, %v427
    %v429 = vmax.f32 %v377, %v379
    %v430 = vrot.slane %v429, 4
    %v431 = vmax.f32 %v429, %v430
    %v432 = vrot.slane %v431, 2
    %v433 = vmax.f32 %v431, %v432
    %v434 = vrot.slane %v433, 1
    %v435 = vmax.f32 %v433, %v434
    %v436 = vmax.f32 %v378, %v380
    %v437 = vrot.slane %v436, 4
    %v438 = vmax.f32 %v436, %v437
    %v439 = vrot.slane %v438, 2
    %v440 = vmax.f32 %v438, %v439
    %v441 = vrot.slane %v440, 1
    %v442 = vmax.f32 %v440, %v441
    %v443 = vmax.f32 %v381, %v383
    %v444 = vrot.slane %v443, 4
    %v445 = vmax.f32 %v443, %v444
    %v446 = vrot.slane %v445, 2
    %v447 = vmax.f32 %v445, %v446
    %v448 = vrot.slane %v447, 1
    %v449 = vmax.f32 %v447, %v448
    %v450 = vmax.f32 %v382, %v384
    %v451 = vrot.slane %v450, 4
    %v452 = vmax.f32 %v450, %v451
    %v453 = vrot.slane %v452, 2
    %v454 = vmax.f32 %v452, %v453
    %v455 = vrot.slane %v454, 1
    %v456 = vmax.f32 %v454, %v455
    %v457 = vmax.f32 %v385, %v387
    %v458 = vrot.slane %v457, 4
    %v459 = vmax.f32 %v457, %v458
    %v460 = vrot.slane %v459, 2
    %v461 = vmax.f32 %v459, %v460
    %v462 = vrot.slane %v461, 1
    %v463 = vmax.f32 %v461, %v462
    %v464 = vmax.f32 %v386, %v388
    %v465 = vrot.slane %v464, 4
    %v466 = vmax.f32 %v464, %v465
    %v467 = vrot.slane %v466, 2
    %v468 = vmax.f32 %v466, %v467
    %v469 = vrot.slane %v468, 1
    %v470 = vmax.f32 %v468, %v469
    %v471 = vmax.f32 %v389, %v391
    %v472 = vrot.slane %v471, 4
    %v473 = vmax.f32 %v471, %v472
    %v474 = vrot.slane %v473, 2
    %v475 = vmax.f32 %v473, %v474
    %v476 = vrot.slane %v475, 1
    %v477 = vmax.f32 %v475, %v476
    %v478 = vmax.f32 %v390, %v392
    %v479 = vrot.slane %v478, 4
    %v480 = vmax.f32 %v478, %v479
    %v481 = vrot.slane %v480, 2
    %v482 = vmax.f32 %v480, %v481
    %v483 = vrot.slane %v482, 1
    %v484 = vmax.f32 %v482, %v483
    %v485 = vmax.f32 %v393, %v395
    %v486 = vrot.slane %v485, 4
    %v487 = vmax.f32 %v485, %v486
    %v488 = vrot.slane %v487, 2
    %v489 = vmax.f32 %v487, %v488
    %v490 = vrot.slane %v489, 1
    %v491 = vmax.f32 %v489, %v490
    %v492 = vmax.f32 %v394, %v396
    %v493 = vrot.slane %v492, 4
    %v494 = vmax.f32 %v492, %v493
    %v495 = vrot.slane %v494, 2
    %v496 = vmax.f32 %v494, %v495
    %v497 = vrot.slane %v496, 1
    %v498 = vmax.f32 %v496, %v497
    %v499 = vmax.f32 %v397, %v399
    %v500 = vrot.slane %v499, 4
    %v501 = vmax.f32 %v499, %v500
    %v502 = vrot.slane %v501, 2
    %v503 = vmax.f32 %v501, %v502
    %v504 = vrot.slane %v503, 1
    %v505 = vmax.f32 %v503, %v504
    %v506 = vmax.f32 %v398, %v400
    %v507 = vrot.slane %v506, 4
    %v508 = vmax.f32 %v506, %v507
    %v509 = vrot.slane %v508, 2
    %v510 = vmax.f32 %v508, %v509
    %v511 = vrot.slane %v510, 1
    %v512 = vmax.f32 %v510, %v511
    %v513 = vld [vmem:[#allocation8] sm:$0xff]
    %v514 = vld [vmem:[#allocation8 + $0x8] sm:$0xff]
    %v515 = vld [vmem:[#allocation8 + $0x10] sm:$0xff]
    %v516 = vld [vmem:[#allocation8 + $0x18] sm:$0xff]
    %v517 = vld [vmem:[#allocation8 + $0x20] sm:$0xff]
    %v518 = vld [vmem:[#allocation8 + $0x28] sm:$0xff]
    %v519 = vld [vmem:[#allocation8 + $0x30] sm:$0xff]
    %v520 = vld [vmem:[#allocation8 + $0x38] sm:$0xff]
    %v521 = vld [vmem:[#allocation8 + $0x40] sm:$0xff]
    %v522 = vld [vmem:[#allocation8 + $0x48] sm:$0xff]
    %v523 = vld [vmem:[#allocation8 + $0x50] sm:$0xff]
    %v524 = vld [vmem:[#allocation8 + $0x58] sm:$0xff]
    %v525 = vld [vmem:[#allocation8 + $0x60] sm:$0xff]
    %v526 = vld [vmem:[#allocation8 + $0x68] sm:$0xff]
    %v527 = vld [vmem:[#allocation8 + $0x70] sm:$0xff]
    %v528 = vld [vmem:[#allocation8 + $0x78] sm:$0xff]
    %v529 = vld [vmem:[#allocation8 + $0x80] sm:$0xff]
    %v530 = vld [vmem:[#allocation8 + $0x88] sm:$0xff]
    %v531 = vld [vmem:[#allocation8 + $0x90] sm:$0xff]
    %v532 = vld [vmem:[#allocation8 + $0x98] sm:$0xff]
    %v533 = vld [vmem:[#allocation8 + $0xa0] sm:$0xff]
    %v534 = vld [vmem:[#allocation8 + $0xa8] sm:$0xff]
    %v535 = vld [vmem:[#allocation8 + $0xb0] sm:$0xff]
    %v536 = vld [vmem:[#allocation8 + $0xb8] sm:$0xff]
    %v537 = vld [vmem:[#allocation8 + $0xc0] sm:$0xff]
    %v538 = vld [vmem:[#allocation8 + $0xc8] sm:$0xff]
    %v539 = vld [vmem:[#allocation8 + $0xd0] sm:$0xff]
    %v540 = vld [vmem:[#allocation8 + $0xd8] sm:$0xff]
    %v541 = vld [vmem:[#allocation8 + $0xe0] sm:$0xff]
    %v542 = vld [vmem:[#allocation8 + $0xe8] sm:$0xff]
    %v543 = vld [vmem:[#allocation8 + $0xf0] sm:$0xff]
    %v544 = vld [vmem:[#allocation8 + $0xf8] sm:$0xff]
    %v545 = vld [vmem:[%s4] sm:$0x1]
    %v547 = vlaneseq
    %v548 = vshrl.u32 %v547, 7
    %v549 = vsub.s32 0, %v548
    %v550 = vrot.slane %v545, %v549
    %vm568 = vcmask 1041409
    %v569 = vsel %vm568, %v421, %v407
    %vm570 = vcmask 1042434
    %v571 = vsel %vm570, %v435, %v569
    %vm572 = vcmask 1043459
    %v573 = vsel %vm572, %v449, %v571
    %vm574 = vcmask 1044484
    %v575 = vsel %vm574, %v463, %v573
    %vm576 = vcmask 1045509
    %v577 = vsel %vm576, %v477, %v575
    %vm578 = vcmask 1046534
    %v579 = vsel %vm578, %v491, %v577
    %vm580 = vcmask 1047559
    %v581 = vsel %vm580, %v505, %v579
    %v582 = vsel %vm568, %v428, %v414
    %v583 = vsel %vm570, %v442, %v582
    %v584 = vsel %vm572, %v456, %v583
    %v585 = vsel %vm574, %v470, %v584
    %v586 = vsel %vm576, %v484, %v585
    %v587 = vsel %vm578, %v498, %v586
    %v588 = vsel %vm580, %v512, %v587
    %591 = vmatprep.subr.mxu0 0.0
    %592 = vmatpush1.msra.mxu0 %v528
    %593 = vmatprep.subr.mxu0 0.0
    %594 = vmatpush1.msra.mxu0 %v527
    %595 = vmatprep.subr.mxu0 0.0
    %596 = vmatpush1.msra.mxu0 %v526
    %597 = vmatprep.subr.mxu0 0.0
    %598 = vmatpush1.msra.mxu0 %v525
    %599 = vmatprep.subr.mxu0 0.0
    %600 = vmatpush1.msra.mxu0 %v524
    %601 = vmatprep.subr.mxu0 0.0
    %602 = vmatpush1.msra.mxu0 %v523
    %603 = vmatprep.subr.mxu0 0.0
    %604 = vmatpush1.msra.mxu0 %v522
    %605 = vmatprep.subr.mxu0 0.0
    %606 = vmatpush1.msra.mxu0 %v521
    %607 = vmatprep.subr.mxu0 0.0
    %608 = vmatpush1.msra.mxu0 %v520
    %609 = vmatprep.subr.mxu0 0.0
    %610 = vmatpush1.msra.mxu0 %v519
    %611 = vmatprep.subr.mxu0 0.0
    %612 = vmatpush1.msra.mxu0 %v518
    %613 = vmatprep.subr.mxu0 0.0
    %614 = vmatpush1.msra.mxu0 %v517
    %615 = vmatprep.subr.mxu0 0.0
    %616 = vmatpush1.msra.mxu0 %v516
    %617 = vmatprep.subr.mxu0 0.0
    %618 = vmatpush1.msra.mxu0 %v515
    %619 = vmatprep.subr.mxu0 0.0
    %620 = vmatpush1.msra.mxu0 %v514
    %621 = vmatprep.subr.mxu0 0.0
    %622 = vmatpush1.msra.mxu0 %v513
    %623 = vmatprep.subr.mxu0 0.0
    %624 = vmatpush2.msra.mxu0 %v544
    %625 = vmatprep.subr.mxu0 0.0
    %626 = vmatpush2.msra.mxu0 %v543
    %627 = vmatprep.subr.mxu0 0.0
    %628 = vmatpush2.msra.mxu0 %v542
    %629 = vmatprep.subr.mxu0 0.0
    %630 = vmatpush2.msra.mxu0 %v541
    %631 = vmatprep.subr.mxu0 0.0
    %632 = vmatpush2.msra.mxu0 %v540
    %633 = vmatprep.subr.mxu0 0.0
    %634 = vmatpush2.msra.mxu0 %v539
    %635 = vmatprep.subr.mxu0 0.0
    %636 = vmatpush2.msra.mxu0 %v538
    %637 = vmatprep.subr.mxu0 0.0
    %638 = vmatpush2.msra.mxu0 %v537
    %639 = vmatprep.subr.mxu0 0.0
    %640 = vmatpush2.msra.mxu0 %v536
    %641 = vmatprep.subr.mxu0 0.0
    %642 = vmatpush2.msra.mxu0 %v535
    %643 = vmatprep.subr.mxu0 0.0
    %644 = vmatpush2.msra.mxu0 %v534
    %645 = vmatprep.subr.mxu0 0.0
    %646 = vmatpush2.msra.mxu0 %v533
    %647 = vmatprep.subr.mxu0 0.0
    %648 = vmatpush2.msra.mxu0 %v532
    %649 = vmatprep.subr.mxu0 0.0
    %650 = vmatpush2.msra.mxu0 %v531
    %651 = vmatprep.subr.mxu0 0.0
    %652 = vmatpush2.msra.mxu0 %v530
    %653 = vmatprep.subr.mxu0 0.0
    %654 = vmatpush2.msra.mxu0 %v529
    %655 = vmatprep.mubr.f32.mxu0 %v588
    %656 = vmatmul.mubr.f32.gmra.mxu0 %v581
    %v657 = vpop.f32.mrf.mxu0
    %v658 = vadd.f32 %v550, %v657
    %v659 = vpop.f32.mrf.mxu0
    %660 = vdwg.mxu0
    %661 = vst [vmem:[#allocation10] sm:$0xff] %v658
    // Predicated region
    $region38: #{tpu_custom_call.1} parent=1 // pred_check
      _
    $region39: #{tpu_custom_call.1} parent=1 // pred_check_branch
      %663 = sbr.rel (0) target = $region41
    $region40: #{tpu_custom_call.1} parent=1 // pred_region
      %s665 = ssub.s32 128, 128
      %666 = vsyncadd [#allocation4], %s665
      %s668 = sshll.u32 [#allocation10], 4
      %s669 = int_to_ptr.vmem [resolvable:$true] %s668
      %671 = dma.vmem_to_hbm [thread:$0]  %s669, 128, %s5, [#allocation4]
    $region41: #{tpu_custom_call.1} parent=1 // pred_fallthru
      _
    // Predicated region
    $region42: #{tpu_custom_call.1} parent=1 // pred_check
      _
    $region43: #{tpu_custom_call.1} parent=1 // pred_check_branch
      %673 = sbr.rel (0) target = $region45
    $region44: #{tpu_custom_call.1} parent=1 // pred_region
      %674 = dma.done [#allocation4], 128
    $region45: #{tpu_custom_call.1} parent=1 // pred_fallthru
      _
    %675 = vsyncpa [#allocation3], 1
    %676 = vsyncpa [#allocation6], 1
    %677 = vsyncpa [#allocation9], 1
    %678 = vsyncpa [#allocation4], 1

</llo_original>
